<compile_context>
chip_gen: v5e
topology: v5e:2x2
jax: 0.10.0
libtpu: 0.0.40
codegen_flags: <defaults>
</compile_context>

<pallas_src>
import functools
import math

import jax
import jax.numpy as jnp
from jax.experimental import pallas as pl
from jax.experimental.pallas import tpu as pltpu


def _sine_embed_kernel(pos_ref, w_ref, phase_ref, x_ref, alpha_ref,
                       out_ref, pe_ref=None, *, x_scale, fold_k, x_fold_bcast):
    """One row-tile of the flattened (and possibly lane-folded) problem.

    pos_ref   : VMEM (tR, k)  f32   position ids (k = 128 // D when folded, else 1)
    w_ref     : VMEM (k,  L)  f32   w[j, l] = inv_freq[(l % D) // 2] if l // D == j else 0
    phase_ref : VMEM (1,  L)  f32   [0, pi/2, 0, pi/2, ...] tiled to L lanes
    x_ref     : VMEM (tR, L), (tR, k) (folded 2-D x), or (tR, 1)   x.dtype
    alpha_ref : SMEM (1,)     f32
    out_ref   : VMEM (tR, L)  x.dtype
    pe_ref    : VMEM (tR, L)  x.dtype (optional second output)
    """
    pos = pos_ref[...]                                  # (tR, k) f32
    w = w_ref[...]                                      # (k,  L) f32

    # angle[r, l] = pos[r, l // D] * inv_il[l % D]; k <= 16, unrolled on the VPU
    # (the kernel is HBM-bound, so these broadcast-mul/adds hide under DMA).
    angle = pos[:, 0:1] * w[0:1, :]
    for j in range(1, fold_k):
        angle = angle + pos[:, j:j + 1] * w[j:j + 1, :]

    # cos(a) = sin(a + pi/2): one transcendental stream instead of sin + cos + select.
    pe = jnp.sin(angle + phase_ref[...])                # (tR, L) f32

    alpha = alpha_ref[0]                                # scalar read from SMEM
    xr = x_ref[...].astype(jnp.float32)
    if x_fold_bcast:
        # 2-D x, lane-folded: expand compact (tR, k) to (tR, L) with the same
        # per-token lane mask (w > 0 exactly where lane-group j owns lane l).
        xv = jnp.where(w[0:1, :] > 0.0, xr[:, 0:1], 0.0)
        for j in range(1, fold_k):
            xv = xv + jnp.where(w[j:j + 1, :] > 0.0, xr[:, j:j + 1], 0.0)
    else:
        xv = xr                                         # (tR, L) or (tR, 1) broadcasts
    if x_scale != 1.0:                                  # static Python check
        xv = xv * x_scale
    out = xv + alpha * pe                               # f32 blend; cast exactly once per store
    out_ref[...] = out.astype(out_ref.dtype)
    if pe_ref is not None:
        pe_ref[...] = pe.astype(pe_ref.dtype)


def sine_embedding(x, position_ids, inv_freq, alpha, *, x_scale=1.0, return_pos_emb=True):
    """Pallas implementation of SineEmbedding.forward.

    Args:
      x:            (B, S, D) or (B, S) array.
      position_ids: (B, S) integer array.
      inv_freq:     (D/2,) float32 buffer.
      alpha:        scalar parameter (shape (1,) or scalar).
      x_scale:      sqrt(D) if the module was built with scale=True, else 1.0.
      return_pos_emb: if False, only `output` is returned (halves HBM writes).
    Returns:
      (output, pos_emb) [or just output], shaped (B, S, D), dtype x.dtype.
    """
    B, S = position_ids.shape
    D = int(inv_freq.shape[0]) * 2
    x_is_full = (x.ndim == 3)
    if x_is_full:
        assert x.shape == (B, S, D)
    else:
        assert x.shape == (B, S)

    # Per-channel frequency / phase, interleaved: channel d uses inv_freq[d // 2] and
    # phase 0 (even d -> sin) or pi/2 (odd d -> cos), since cos(a) = sin(a + pi/2).
    inv_il = jnp.repeat(inv_freq.astype(jnp.float32), 2)                          # (D,)
    phase_il = jnp.tile(jnp.asarray([0.0, math.pi / 2.0], jnp.float32), D // 2)   # (D,)

    # Lane-dense folding: view (B*S, D) as (R, 128) (a free contiguous reshape) when D < 128.
    fold = (D < 128 and 128 % D == 0 and (128 // D) <= 16
            and (B * S) % (128 // D) == 0)
    x_fold_bcast = False
    if fold:
        k = 128 // D
        L = 128
        R = (B * S) // k
        pos_rows = position_ids.astype(jnp.float32).reshape(R, k)
        lane = jnp.arange(L, dtype=jnp.int32)
        w = jnp.where((lane[None, :] // D) == jnp.arange(k, dtype=jnp.int32)[:, None],
                      jnp.tile(inv_il, k)[None, :], 0.0).astype(jnp.float32)      # (k, L)
        phase = jnp.tile(phase_il, k).reshape(1, L)
        if x_is_full:
            x_rows = x.reshape(R, L)
        else:
            x_rows = x.reshape(R, k)          # expanded in-kernel, never broadcast in HBM
            x_fold_bcast = True
    else:
        k = 1
        L = D
        R = B * S
        pos_rows = position_ids.astype(jnp.float32).reshape(R, 1)
        w = inv_il.reshape(1, L)
        phase = phase_il.reshape(1, L)
        x_rows = x.reshape(R, D) if x_is_full else x.reshape(R, 1)

    alpha_s = jnp.asarray(alpha, jnp.float32).reshape(1)

    # Row tile: ~2 MiB of f32 per large buffer, multiple of 8 sublanes.
    # Per step: up to 3 big tiles (x, out, pe) + lane-padded pos tile, double-buffered
    # -> well under the scoped VMEM limit on v5e/v6e/v7x.
    target_rows = max(8, ((2 << 20) // (L * 4)) // 8 * 8)
    tr = R if R <= target_rows else target_rows
    grid = (pl.cdiv(R, tr),)
    x_cols = x_rows.shape[1]

    kernel = functools.partial(_sine_embed_kernel, x_scale=float(x_scale),
                               fold_k=k, x_fold_bcast=x_fold_bcast)

    out_shape = [jax.ShapeDtypeStruct((R, L), x.dtype)]
    out_specs = [pl.BlockSpec((tr, L), lambda t: (t, 0))]
    if return_pos_emb:
        out_shape.append(jax.ShapeDtypeStruct((R, L), x.dtype))
        out_specs.append(pl.BlockSpec((tr, L), lambda t: (t, 0)))

    results = pl.pallas_call(
        kernel,
        out_shape=tuple(out_shape),
        grid_spec=pltpu.PrefetchScalarGridSpec(
            num_scalar_prefetch=0,
            grid=grid,
            in_specs=[
                pl.BlockSpec((tr, k), lambda t: (t, 0)),              # position ids (compact)
                pl.BlockSpec((k, L), lambda t: (0, 0)),               # masked inv-freq rows (shared)
                pl.BlockSpec((1, L), lambda t: (0, 0)),               # phase vector (shared)
                pl.BlockSpec((tr, x_cols), lambda t: (t, 0)),         # x (full, compact, or column)
                pl.BlockSpec(memory_space=pltpu.MemorySpace.SMEM),    # alpha scalar
            ],
            out_specs=out_specs,
        ),
        compiler_params=pltpu.CompilerParams(
            dimension_semantics=("parallel",),
            vmem_limit_bytes=32 * 1024 * 1024,
        ),
    )(pos_rows, w, phase, x_rows, alpha_s)

    if not isinstance(results, (tuple, list)):
        results = (results,)
    out = results[0].reshape(B, S, D)
    if return_pos_emb:
        return out, results[1].reshape(B, S, D)
    return out


# TODO(synk): dropout with p > 0 (training mode) is not implemented; the module
# default (p = 0.0) makes it an identity, which is what is reproduced here.


if __name__ == "__main__":
    key = jax.random.PRNGKey(0)

    def make_inv_freq(d_model):
        return 1.0 / (10000.0 ** (jnp.arange(0, d_model, 2, dtype=jnp.float32) / d_model))

    def reference(x, position_ids, inv_freq, alpha_val, x_scale):
        B, S = position_ids.shape
        D = inv_freq.shape[0] * 2
        freqs = position_ids.astype(jnp.float32)[:, :, None] * inv_freq[None, None, :]
        pe = jnp.stack([jnp.sin(freqs), jnp.cos(freqs)], axis=-1).reshape(B, S, D)
        xb = x[..., None] if x.ndim == 2 else x
        out = xb.astype(jnp.float32) * x_scale + alpha_val * pe
        return out.astype(x.dtype), pe.astype(x.dtype)

    checks = []

    # Config 1: d_model=32 (D < 128 -> lane-folded path), scale=False, alpha=1.
    B, S, D = 2, 8, 32
    k1, k2 = jax.random.split(key)
    x = jax.random.normal(k1, (B, S, D), dtype=jnp.float32)
    pos = jnp.broadcast_to(jnp.arange(S, dtype=jnp.int32), (B, S))
    inv = make_inv_freq(D)
    alpha = jnp.ones((1,), jnp.float32)
    out, pe = sine_embedding(x, pos, inv, alpha, x_scale=1.0)
    out_r, pe_r = reference(x, pos, inv, alpha[0], 1.0)
    checks += [(out, out_r), (pe, pe_r)]

    # Config 1b: same, but output-only (return_pos_emb=False path).
    out_only = sine_embedding(x, pos, inv, alpha, x_scale=1.0, return_pos_emb=False)
    checks += [(out_only, out_r)]

    # Config 2: d_model=128 (already lane-dense), scale=True, alpha=1.5.
    B2, S2, D2 = 2, 8, 128
    x2 = jax.random.normal(k2, (B2, S2, D2), dtype=jnp.float32)
    pos2 = jnp.broadcast_to(jnp.arange(S2, dtype=jnp.int32), (B2, S2))
    inv2 = make_inv_freq(D2)
    alpha2 = jnp.full((1,), 1.5, jnp.float32)
    xs2 = math.sqrt(D2)
    out2, pe2 = sine_embedding(x2, pos2, inv2, alpha2, x_scale=xs2)
    out2_r, pe2_r = reference(x2, pos2, inv2, alpha2[0], xs2)
    checks += [(out2, out2_r), (pe2, pe2_r)]

    # Config 3: 2-D x path, d_model=32 -> lane-folded with in-kernel x broadcast.
    x3 = jax.random.normal(jax.random.PRNGKey(3), (B, S), dtype=jnp.float32)
    out3, pe3 = sine_embedding(x3, pos, inv, alpha, x_scale=1.0)
    out3_r, pe3_r = reference(x3, pos, inv, alpha[0], 1.0)
    checks += [(out3, out3_r), (pe3, pe3_r)]

    for got, want in checks:
        jax.block_until_ready(got)
        assert got.shape == want.shape and got.dtype == want.dtype
        assert jnp.allclose(got, want, atol=1e-5, rtol=1e-5), float(jnp.max(jnp.abs(got - want)))

    print("KERNEL_OK")
</pallas_src>

<mosaic_0001>
module attributes {stable_mosaic.version = 11 : i64} {
  func.func @_sine_embed_kernel(%arg0: i32, %arg1: memref<4x4xf32, #tpu.memory_space<vmem>>, %arg2: memref<4x128xf32, #tpu.memory_space<vmem>>, %arg3: memref<1x128xf32, #tpu.memory_space<vmem>>, %arg4: memref<4x128xf32, #tpu.memory_space<vmem>>, %arg5: memref<1xf32, #tpu.memory_space<smem>>, %arg6: memref<4x128xf32, #tpu.memory_space<vmem>>, %arg7: memref<4x128xf32, #tpu.memory_space<vmem>>) attributes {dimension_semantics = [#tpu.dimension_semantics<parallel>], iteration_bounds = array<i64: 1>, scalar_prefetch = 0 : i64, scratch_operands = 0 : i64, tpu.core_type = #tpu.core_type<tc>, window_params = [{transform_indices = @transform_0, window_bounds = array<i64: 4, 4>}, {pipeline_mode = #tpu.pipeline_mode<synchronous>, transform_indices = @transform_1, window_bounds = array<i64: 4, 128>}, {pipeline_mode = #tpu.pipeline_mode<synchronous>, transform_indices = @transform_2, window_bounds = array<i64: 1, 128>}, {transform_indices = @transform_3, window_bounds = array<i64: 4, 128>}, {transform_indices = @transform_4, window_bounds = array<i64: 1>}, {transform_indices = @transform_5, window_bounds = array<i64: 4, 128>}, {transform_indices = @transform_6, window_bounds = array<i64: 4, 128>}]} {
    %c0 = arith.constant 0 : index
    %c0_0 = arith.constant 0 : index
    %0 = vector.load %arg1[%c0, %c0_0] : memref<4x4xf32, #tpu.memory_space<vmem>>, vector<4x4xf32>
    %c0_1 = arith.constant 0 : index
    %c0_2 = arith.constant 0 : index
    %1 = vector.load %arg2[%c0_1, %c0_2] : memref<4x128xf32, #tpu.memory_space<vmem>>, vector<4x128xf32>
    %2 = vector.extract_strided_slice %0 {offsets = [0, 0], sizes = [4, 1], strides = [1, 1]} : vector<4x4xf32> to vector<4x1xf32>
    %3 = vector.extract_strided_slice %1 {offsets = [0, 0], sizes = [1, 128], strides = [1, 1]} : vector<4x128xf32> to vector<1x128xf32>
    %4 = vector.broadcast %2 : vector<4x1xf32> to vector<4x128xf32>
    %5 = vector.broadcast %3 : vector<1x128xf32> to vector<4x128xf32>
    %6 = arith.mulf %4, %5 : vector<4x128xf32>
    %7 = vector.extract_strided_slice %0 {offsets = [0, 1], sizes = [4, 1], strides = [1, 1]} : vector<4x4xf32> to vector<4x1xf32>
    %8 = vector.extract_strided_slice %1 {offsets = [1, 0], sizes = [1, 128], strides = [1, 1]} : vector<4x128xf32> to vector<1x128xf32>
    %9 = vector.broadcast %7 : vector<4x1xf32> to vector<4x128xf32>
    %10 = vector.broadcast %8 : vector<1x128xf32> to vector<4x128xf32>
    %11 = arith.mulf %9, %10 : vector<4x128xf32>
    %12 = arith.addf %6, %11 : vector<4x128xf32>
    %13 = vector.extract_strided_slice %0 {offsets = [0, 2], sizes = [4, 1], strides = [1, 1]} : vector<4x4xf32> to vector<4x1xf32>
    %14 = vector.extract_strided_slice %1 {offsets = [2, 0], sizes = [1, 128], strides = [1, 1]} : vector<4x128xf32> to vector<1x128xf32>
    %15 = vector.broadcast %13 : vector<4x1xf32> to vector<4x128xf32>
    %16 = vector.broadcast %14 : vector<1x128xf32> to vector<4x128xf32>
    %17 = arith.mulf %15, %16 : vector<4x128xf32>
    %18 = arith.addf %12, %17 : vector<4x128xf32>
    %19 = vector.extract_strided_slice %0 {offsets = [0, 3], sizes = [4, 1], strides = [1, 1]} : vector<4x4xf32> to vector<4x1xf32>
    %20 = vector.extract_strided_slice %1 {offsets = [3, 0], sizes = [1, 128], strides = [1, 1]} : vector<4x128xf32> to vector<1x128xf32>
    %21 = vector.broadcast %19 : vector<4x1xf32> to vector<4x128xf32>
    %22 = vector.broadcast %20 : vector<1x128xf32> to vector<4x128xf32>
    %23 = arith.mulf %21, %22 : vector<4x128xf32>
    %24 = arith.addf %18, %23 : vector<4x128xf32>
    %c0_3 = arith.constant 0 : index
    %c0_4 = arith.constant 0 : index
    %25 = vector.load %arg3[%c0_3, %c0_4] : memref<1x128xf32, #tpu.memory_space<vmem>>, vector<1x128xf32>
    %26 = vector.broadcast %25 : vector<1x128xf32> to vector<4x128xf32>
    %27 = arith.addf %24, %26 : vector<4x128xf32>
    %28 = math.sin %27 : vector<4x128xf32>
    %c0_5 = arith.constant 0 : index
    %29 = memref.load %arg5[%c0_5] : memref<1xf32, #tpu.memory_space<smem>>
    %c0_6 = arith.constant 0 : index
    %c0_7 = arith.constant 0 : index
    %30 = vector.load %arg4[%c0_6, %c0_7] : memref<4x128xf32, #tpu.memory_space<vmem>>, vector<4x128xf32>
    %31 = vector.broadcast %29 : f32 to vector<4x128xf32>
    %32 = arith.mulf %31, %28 : vector<4x128xf32>
    %33 = arith.addf %30, %32 : vector<4x128xf32>
    %c0_8 = arith.constant 0 : index
    %c0_9 = arith.constant 0 : index
    %34 = vector.load %arg6[%c0_8, %c0_9] : memref<4x128xf32, #tpu.memory_space<vmem>>, vector<4x128xf32>
    tpu.vector_store %arg6[%c0_8, %c0_9], %33 {strides = array<i32>} : memref<4x128xf32, #tpu.memory_space<vmem>>, vector<4x128xf32>,
    %c0_10 = arith.constant 0 : index
    %c0_11 = arith.constant 0 : index
    %35 = vector.load %arg7[%c0_10, %c0_11] : memref<4x128xf32, #tpu.memory_space<vmem>>, vector<4x128xf32>
    tpu.vector_store %arg7[%c0_10, %c0_11], %28 {strides = array<i32>} : memref<4x128xf32, #tpu.memory_space<vmem>>, vector<4x128xf32>,
    return
  }
  func.func @transform_0(%arg0: i32) -> (i32, i32) {
    %c0_i32 = arith.constant 0 : i32
    %c0_i32_0 = arith.constant 0 : i32
    return %arg0, %c0_i32 : i32, i32
  }
  func.func @transform_1(%arg0: i32) -> (i32, i32) {
    %c0_i32 = arith.constant 0 : i32
    %c0_i32_0 = arith.constant 0 : i32
    %c0_i32_1 = arith.constant 0 : i32
    return %c0_i32, %c0_i32_0 : i32, i32
  }
  func.func @transform_2(%arg0: i32) -> (i32, i32) {
    %c0_i32 = arith.constant 0 : i32
    %c0_i32_0 = arith.constant 0 : i32
    %c0_i32_1 = arith.constant 0 : i32
    return %c0_i32, %c0_i32_0 : i32, i32
  }
  func.func @transform_3(%arg0: i32) -> (i32, i32) {
    %c0_i32 = arith.constant 0 : i32
    %c0_i32_0 = arith.constant 0 : i32
    return %arg0, %c0_i32 : i32, i32
  }
  func.func @transform_4(%arg0: i32) -> i32 {
    %c0_i32 = arith.constant 0 : i32
    %c0_i32_0 = arith.constant 0 : i32
    return %c0_i32 : i32
  }
  func.func @transform_5(%arg0: i32) -> (i32, i32) {
    %c0_i32 = arith.constant 0 : i32
    %c0_i32_0 = arith.constant 0 : i32
    return %arg0, %c0_i32 : i32, i32
  }
  func.func @transform_6(%arg0: i32) -> (i32, i32) {
    %c0_i32 = arith.constant 0 : i32
    %c0_i32_0 = arith.constant 0 : i32
    return %arg0, %c0_i32 : i32, i32
  }
}

</mosaic_0001>

<llo_original>
// kernel: tpu_custom_call.1
$region0: #{tpu_custom_call.1}
  #allocation0 [shape = 'u32[]', space=smem, size = 0x4, offset = 0x4, fixed_abs, tag = 'smem constant byte address 0x4 - core index']
  #allocation1 [shape = 'u32[72,128]{1,0:T(1,128)}', space=vmem, size = 0x9000, scoped, tag = 'internal scratch']
  #allocation2 [shape = 'f32[1]{0:T(128)S(6)}', space=smem, size = 0x200, scoped, tag = 'scoped memory for tpu_custom_call.1']
  %s0 = inlined_call_operand.hbm [shape: f32[4,4], index: 0, kind: input, shape index: {}]
  %s1 = inlined_call_operand.hbm [shape: f32[4,128], index: 1, kind: input, shape index: {}]
  %s2 = inlined_call_operand.hbm [shape: f32[1,128], index: 2, kind: input, shape index: {}]
  %s3 = inlined_call_operand.vmem [shape: f32[4,128], index: 3, kind: input, shape index: {}]
  %s4 = inlined_call_operand.<no memory space> [shape: f32[1], index: 4, kind: input, shape index: {}]
  %s5 = inlined_call_operand.hbm [shape: f32[4,128], index: 5, kind: output, shape index: {0}]
  %s6 = inlined_call_operand.hbm [shape: f32[4,128], index: 6, kind: output, shape index: {1}]
  %7 = xla_tuple %s5, %s6
  %s8 = sld [smem:[#allocation0]]
  $region50: #{tpu_custom_call.1} parent=0
    _
  %s10 = ssub.s32 1, %s8
  %s11 = scalar_select 0, %s10, %s8
  %12 = sst [smem:[#allocation2]] %s4
  $region1: #{tpu_custom_call.1} parent=0
    #allocation3 [shape = 'u8[2048]{0}', space=vmem, size = 0x800, scoped, tag = 'input window, operand 0, single buffered']
    #allocation4 [shape = 's32[1]{0}', space=sflag, size = 0x4, scoped, tag = 'scoped memory for tpu_custom_call.1']
    #allocation5 [shape = 's32[1]{0}', space=sflag, size = 0x4, scoped, tag = 'scoped memory for tpu_custom_call.1']
    #allocation6 [shape = 'u8[2048]{0}', space=vmem, size = 0x800, scoped, tag = 'input window, operand 1, single buffered']
    #allocation7 [shape = 's32[1]{0}', space=sflag, size = 0x4, scoped, tag = 'scoped memory for tpu_custom_call.1']
    #allocation8 [shape = 'u8[512]{0}', space=vmem, size = 0x400, scoped, tag = 'input window, operand 2, single buffered']
    #allocation9 [shape = 'u8[2048]{0}', space=vmem, size = 0x800, scoped, tag = 'output window, operand 0, single buffered']
    #allocation10 [shape = 'u8[2048]{0}', space=vmem, size = 0x800, scoped, tag = 'output window, operand 1, single buffered']
    #allocation11 [shape = 's32[1]{0}', space=sflag, size = 0x4, scoped, tag = 'scoped memory for tpu_custom_call.1']
    %13 = vsyncpa [#allocation4], 0
    %14 = vsyncpa [#allocation7], 0
    %15 = vsyncpa [#allocation5], 0
    %16 = vsyncpa [#allocation11], 0
    // Predicated region
    $region2: #{tpu_custom_call.1} parent=1 // pred_check
      _
    $region3: #{tpu_custom_call.1} parent=1 // pred_check_branch
      %18 = sbr.rel (0) target = $region5
    $region4: #{tpu_custom_call.1} parent=1 // pred_region
      %20 = vsyncadd [#allocation4], 0
      %s22 = sshll.u32 %s0, 4
      %s23 = int_to_ptr.hbm [resolvable:$true] %s22
      %s24 = sshll.u32 [#allocation3], 4
      %s25 = int_to_ptr.vmem [resolvable:$true] %s24
      %27 = dma.hbm_to_vmem [thread:$0]  %s23, 64, %s25, [#allocation4]
    $region5: #{tpu_custom_call.1} parent=1 // pred_fallthru
      _
    // Predicated region
    $region6: #{tpu_custom_call.1} parent=1 // pred_check
      _
    $region7: #{tpu_custom_call.1} parent=1 // pred_check_branch
      %29 = sbr.rel (0) target = $region9
    $region8: #{tpu_custom_call.1} parent=1 // pred_region
      %31 = vsyncadd [#allocation7], 0
      %s33 = sshll.u32 %s1, 4
      %s34 = int_to_ptr.hbm [resolvable:$true] %s33
      %s35 = sshll.u32 [#allocation6], 4
      %s36 = int_to_ptr.vmem [resolvable:$true] %s35
      %38 = dma.hbm_to_vmem [thread:$0]  %s34, 64, %s36, [#allocation7]
    $region9: #{tpu_custom_call.1} parent=1 // pred_fallthru
      _
    // Predicated region
    $region10: #{tpu_custom_call.1} parent=1 // pred_check
      _
    $region11: #{tpu_custom_call.1} parent=1 // pred_check_branch
      %40 = sbr.rel (0) target = $region13
    $region12: #{tpu_custom_call.1} parent=1 // pred_region
      %42 = vsyncadd [#allocation7], 0
      %s44 = sshll.u32 %s2, 4
      %s45 = int_to_ptr.hbm [resolvable:$true] %s44
      %s46 = sshll.u32 [#allocation8], 4
      %s47 = int_to_ptr.vmem [resolvable:$true] %s46
      %49 = dma.hbm_to_vmem [thread:$0]  %s45, 16, %s47, [#allocation7]
    $region13: #{tpu_custom_call.1} parent=1 // pred_fallthru
      _
    // Predicated region
    $region14: #{tpu_custom_call.1} parent=1 // pred_check
      _
    $region15: #{tpu_custom_call.1} parent=1 // pred_check_branch
      %51 = sbr.rel (0) target = $region17
    $region16: #{tpu_custom_call.1} parent=1 // pred_region
      _
    $region17: #{tpu_custom_call.1} parent=1 // pred_fallthru
      _
    // Predicated region
    $region18: #{tpu_custom_call.1} parent=1 // pred_check
      _
    $region19: #{tpu_custom_call.1} parent=1 // pred_check_branch
      %53 = sbr.rel (0) target = $region21
    $region20: #{tpu_custom_call.1} parent=1 // pred_region
      _
    $region21: #{tpu_custom_call.1} parent=1 // pred_fallthru
      _
    // Predicated region
    $region22: #{tpu_custom_call.1} parent=1 // pred_check
      _
    $region23: #{tpu_custom_call.1} parent=1 // pred_check_branch
      %55 = sbr.rel (0) target = $region25
    $region24: #{tpu_custom_call.1} parent=1 // pred_region
      %57 = dma.done [#allocation4], 64
    $region25: #{tpu_custom_call.1} parent=1 // pred_fallthru
      _
    // Predicated region
    $region26: #{tpu_custom_call.1} parent=1 // pred_check
      _
    $region27: #{tpu_custom_call.1} parent=1 // pred_check_branch
      %59 = sbr.rel (0) target = $region29
    $region28: #{tpu_custom_call.1} parent=1 // pred_region
      %61 = dma.done [#allocation7], 64
    $region29: #{tpu_custom_call.1} parent=1 // pred_fallthru
      _
    // Predicated region
    $region30: #{tpu_custom_call.1} parent=1 // pred_check
      _
    $region31: #{tpu_custom_call.1} parent=1 // pred_check_branch
      %63 = sbr.rel (0) target = $region33
    $region32: #{tpu_custom_call.1} parent=1 // pred_region
      %65 = dma.done [#allocation7], 16
    $region33: #{tpu_custom_call.1} parent=1 // pred_fallthru
      _
    %v66 = vld [vmem:[#allocation3] sm:$0xf]
    %v67 = vld [vmem:[#allocation6] sm:$0xf]
    %69 = vset.pattern.permute.xlu0 0
    %70 = vperm.xlu0 %69, %v66
    %v71 = vpop.permute.xlu0 %70
    %v73 = vperm.slane %v67, 0
    %v74 = vmul.f32 %v71, %v73
    %75 = vset.pattern.permute.xlu0 1
    %76 = vperm.xlu0 %75, %v66
    %v77 = vpop.permute.xlu0 %76
    %v79 = vperm.slane %v67, 1
    %v80 = vmul.f32 %v77, %v79
    %v81 = vadd.f32 %v74, %v80
    %82 = vset.pattern.permute.xlu0 2
    %83 = vperm.xlu0 %82, %v66
    %v84 = vpop.permute.xlu0 %83
    %v86 = vperm.slane %v67, 2
    %v87 = vmul.f32 %v84, %v86
    %v88 = vadd.f32 %v81, %v87
    %89 = vset.pattern.permute.xlu0 3
    %90 = vperm.xlu0 %89, %v66
    %v91 = vpop.permute.xlu0 %90
    %v93 = vperm.slane %v67, 3
    %v94 = vmul.f32 %v91, %v93
    %v95 = vadd.f32 %v88, %v94
    %v96 = vld [vmem:[#allocation8] sm:$0x1]
    %v98 = vperm.slane %v96, 0
    %v100 = vadd.f32 %v95, %v98
    %v101 = vand.u32 2147483647, %v100
    %vm102 = vcmp.le.f32.partialorder %v101, 0.7853982
    %vm103 = vcmp.lt.s32.totalorder %v100, 0
    %v104 = vand.u32 %v100, 2139095040
    %v105 = vshrl.u32 %v104, 23
    %v106 = vsub.s32 %v105, 127
    %v107 = vand.u32 2147483647, %v100
    %v108 = vand.u32 %v107, 8388607
    %v109 = vor.u32 %v108, 8388608
    %v110 = vsub.s32 0, %v109
    %v111 = vadd.s32 %v106, 1
    %vm112 = vcmp.gt.s32.totalorder %v111, 0
    %v113 = vsel %vm112, %v111, 0
    %v114 = vshrl.u32 %v113, 5
    %v115 = vand.u32 %v113, 31
    %v116 = vsub.s32 32, %v115
    %v117 = vshrl.u32 683565275, %v116
    %v118 = vshll.u32 683565275, %v115
    %v119 = vshrl.u32 2475754826, %v116
    %v120 = vor.u32 %v118, %v119
    %v121 = vshll.u32 2475754826, %v115
    %v122 = vshrl.u32 2131351028, %v116
    %v123 = vor.u32 %v121, %v122
    %v124 = vshll.u32 2131351028, %v115
    %v125 = vshrl.u32 2102212464, %v116
    %v126 = vor.u32 %v124, %v125
    %v127 = vshll.u32 2102212464, %v115
    %v128 = vshrl.u32 920167782, %v116
    %v129 = vor.u32 %v127, %v128
    %v130 = vshll.u32 920167782, %v115
    %v131 = vshrl.u32 1326507024, %v116
    %v132 = vor.u32 %v130, %v131
    %vm133 = vcmp.lt.s32.totalorder %v114, 1
    %vm134 = vcmp.lt.s32.totalorder %v114, 2
    %vm135 = vcmp.lt.s32.totalorder %v114, 3
    %vm136 = vcmp.lt.s32.totalorder %v114, 4
    %v137 = vsel %vm133, %v117, %v120
    %v138 = vsel %vm136, %v126, 2102212464
    %v139 = vsel %vm135, %v123, %v138
    %v140 = vsel %vm134, %v137, %v139
    %v141 = vsel %vm133, %v120, %v123
    %v142 = vsel %vm136, %v129, 920167782
    %v143 = vsel %vm135, %v126, %v142
    %v144 = vsel %vm134, %v141, %v143
    %v145 = vsel %vm133, %v123, %v126
    %v146 = vsel %vm136, %v132, 1326507024
    %v147 = vsel %vm135, %v129, %v146
    %v148 = vsel %vm134, %v145, %v147
    %v149 = vshll.u32 %v109, 8
    %v150 = vand.u32 %v149, 65535
    %v151 = vshrl.u32 %v149, 16
    %v152 = vand.u32 %v148, 65535
    %v153 = vshrl.u32 %v148, 16
    %v154 = vmul.u32 %v150, %v152
    %v155 = vmul.u32 %v150, %v153
    %v156 = vmul.u32 %v151, %v152
    %v157 = vmul.u32 %v151, %v153
    %v158 = vshll.u32 %v155, 16
    %v159 = vshrl.u32 %v155, 16
    %v160 = vshll.u32 %v156, 16
    %v161 = vshrl.u32 %v156, 16
    %vm162 = vc.u32 %v154, %v158
    %v163 = vsel %vm162, 1, 0
    %v164 = vadd.s32 %v154, %v158
    %v165 = vadd.s32 %v157, %v163
    %vm166 = vc.u32 %v164, %v160
    %v167 = vsel %vm166, 1, 0
    %v168 = vadd.s32 %v164, %v160
    %v169 = vadd.s32 %v165, %v167
    %v170 = vadd.s32 %v169, %v159
    %v171 = vadd.s32 %v170, %v161
    %v172 = vand.u32 %v149, 65535
    %v173 = vshrl.u32 %v149, 16
    %v174 = vand.u32 %v144, 65535
    %v175 = vshrl.u32 %v144, 16
    %v176 = vmul.u32 %v172, %v174
    %v177 = vmul.u32 %v172, %v175
    %v178 = vmul.u32 %v173, %v174
    %v179 = vmul.u32 %v173, %v175
    %v180 = vshll.u32 %v177, 16
    %v181 = vshrl.u32 %v177, 16
    %v182 = vshll.u32 %v178, 16
    %v183 = vshrl.u32 %v178, 16
    %vm184 = vc.u32 %v176, %v180
    %v185 = vsel %vm184, 1, 0
    %v186 = vadd.s32 %v176, %v180
    %v187 = vadd.s32 %v179, %v185
    %vm188 = vc.u32 %v186, %v182
    %v189 = vsel %vm188, 1, 0
    %v190 = vadd.s32 %v186, %v182
    %v191 = vadd.s32 %v187, %v189
    %v192 = vadd.s32 %v191, %v181
    %v193 = vadd.s32 %v192, %v183
    %v194 = vmul.u32 %v149, %v140
    %v195 = vadd.s32 %v171, %v190
    %vm196 = vc.u32 %v171, %v190
    %v197 = vadd.s32 %v193, 1
    %v198 = vsel %vm196, %v197, %v193
    %v199 = vadd.s32 %v194, %v198
    %v200 = vadd.s32 %v199, 536870912
    %v201 = vshrl.u32 %v200, 30
    %v202 = vshll.u32 %v201, 30
    %v203 = vsub.s32 %v199, %v202
    %vm204 = vcmp.lt.s32.totalorder %v203, 0
    %v205 = vsub.s32 0, %v203
    %v206 = vsel %vm204, %v205, %v203
    %v207 = vclz %v206
    %v208 = vsub.s32 %v207, 2
    %vm209 = vcmp.gt.s32.totalorder 0, %v208
    %v210 = vsel %vm209, 0, %v208
    %v211 = vsub.s32 32, %v210
    %v212 = vshll.u32 %v203, %v210
    %v213 = vshrl.u32 %v195, %v211
    %v214 = vor.u32 %v212, %v213
    %v215 = vsub.s32 4294967266, %v210
    %v216 = vadd.s32 %v215, 127
    %v217 = vshll.u32 %v216, 23
    %v218 = vor.u32 4788187, %v217
    %v219 = vand.u32 2147483647, %v218
    %v221 = vcvt.s32.f32 %v214
    %v222 = vmul.f32 %v221, %v219
    %v223 = vxor.u32 %v222, 2147483648
    %v224 = vsel %vm103, %v223, %v222
    %v225 = vsub.s32 4, %v201
    %v226 = vsel %vm103, %v225, %v201
    %v227 = vsel %vm102, %v100, %v224
    %v228 = vsel %vm102, 0, %v226
    %v229 = vmul.f32 %v227, %v227
    %v230 = vmul.f32 %v229, -0.001358992
    %v231 = vadd.f32 %v230, 0.041655596
    %v232 = vmul.f32 %v229, %v231
    %v233 = vadd.f32 %v232, -0.4999988
    %v234 = vmul.f32 %v229, %v233
    %v235 = vadd.f32 1.0, %v234
    %v236 = vmul.f32 %v227, %v227
    %v237 = vmul.f32 %v236, -0.00019511016
    %v238 = vadd.f32 %v237, 0.008332121
    %v239 = vmul.f32 %v236, %v238
    %v240 = vadd.f32 %v239, -0.16666654
    %v241 = vmul.f32 %v236, %v240
    %v242 = vadd.f32 %v241, 1.0
    %v243 = vmul.f32 %v242, %v227
    %vm244 = vweird.f32 %v100
    %v245 = vadd.s32 %v228, 3
    %v246 = vand.u32 %v245, 3
    %vm247 = vcmp.lt.s32.totalorder %v246, 2
    %vm248 = vcmp.eq.s32.totalorder %v246, 0
    %v249 = vxor.u32 %v243, 2147483648
    %v250 = vsel %vm248, %v235, %v249
    %vm251 = vcmp.eq.s32.totalorder %v246, 2
    %v252 = vxor.u32 %v235, 2147483648
    %v253 = vsel %vm251, %v252, %v243
    %v254 = vsel %vm247, %v250, %v253
    %v255 = vsel %vm244, nan, %v254
    %s256 = sld [smem:[#allocation2]]
    %v257 = vld [vmem:[%s3] sm:$0xf]
    %v258 = vstv %s256
    %v259 = vmul.f32 %v258, %v255
    %v260 = vadd.f32 %v257, %v259
    %261 = vst [vmem:[#allocation9] sm:$0xf] %v260
    %262 = vst [vmem:[#allocation10] sm:$0xf] %v255
    // Predicated region
    $region34: #{tpu_custom_call.1} parent=1 // pred_check
      _
    $region35: #{tpu_custom_call.1} parent=1 // pred_check_branch
      %264 = sbr.rel (0) target = $region37
    $region36: #{tpu_custom_call.1} parent=1 // pred_region
      %266 = vsyncadd [#allocation5], 0
      %s268 = sshll.u32 [#allocation9], 4
      %s269 = int_to_ptr.vmem [resolvable:$true] %s268
      %s270 = sshll.u32 %s5, 4
      %s271 = int_to_ptr.hbm [resolvable:$true] %s270
      %273 = dma.vmem_to_hbm [thread:$0]  %s269, 64, %s271, [#allocation5]
    $region37: #{tpu_custom_call.1} parent=1 // pred_fallthru
      _
    // Predicated region
    $region38: #{tpu_custom_call.1} parent=1 // pred_check
      _
    $region39: #{tpu_custom_call.1} parent=1 // pred_check_branch
      %275 = sbr.rel (0) target = $region41
    $region40: #{tpu_custom_call.1} parent=1 // pred_region
      %277 = vsyncadd [#allocation11], 0
      %s279 = sshll.u32 [#allocation10], 4
      %s280 = int_to_ptr.vmem [resolvable:$true] %s279
      %s281 = sshll.u32 %s6, 4
      %s282 = int_to_ptr.hbm [resolvable:$true] %s281
      %284 = dma.vmem_to_hbm [thread:$0]  %s280, 64, %s282, [#allocation11]
    $region41: #{tpu_custom_call.1} parent=1 // pred_fallthru
      _
    // Predicated region
    $region42: #{tpu_custom_call.1} parent=1 // pred_check
      _
    $region43: #{tpu_custom_call.1} parent=1 // pred_check_branch
      %286 = sbr.rel (0) target = $region45
    $region44: #{tpu_custom_call.1} parent=1 // pred_region
      %288 = dma.done [#allocation5], 64
    $region45: #{tpu_custom_call.1} parent=1 // pred_fallthru
      _
    // Predicated region
    $region46: #{tpu_custom_call.1} parent=1 // pred_check
      _
    $region47: #{tpu_custom_call.1} parent=1 // pred_check_branch
      %290 = sbr.rel (0) target = $region49
    $region48: #{tpu_custom_call.1} parent=1 // pred_region
      %292 = dma.done [#allocation11], 64
    $region49: #{tpu_custom_call.1} parent=1 // pred_fallthru
      _
    %293 = vsyncpa [#allocation4], 1
    %294 = vsyncpa [#allocation7], 1
    %295 = vsyncpa [#allocation5], 1
    %296 = vsyncpa [#allocation11], 1

</llo_original>
